<compile_context>
chip_gen: v6e
topology: v6e:2x2x1
jax: 0.10.0
libtpu: 0.0.40
codegen_flags: <defaults>
</compile_context>

<pallas_src>
import functools
import numpy as np
import jax
import jax.numpy as jnp
from jax.experimental import pallas as pl
from jax.experimental.pallas import tpu as pltpu

_LANES = 128
_DEFAULT_TILE_ROWS = 1024          # (1024, 128) f32 block = 512 KiB / buffer


def _round_up(n: int, m: int) -> int:
    return ((n + m - 1) // m) * m


# ----------------------------------------------------------------------------
# Pallas kernel: fused sigmoid focal loss on a lane-dense (TILE, 128) block.
# All operands share the same flat layout; weights are pre-expanded per element.
# ----------------------------------------------------------------------------
def _focal_loss_kernel(x_ref, t_ref, w_ref, o_ref, *, alpha, gamma):
    x = x_ref[...].astype(jnp.float32)       # logits
    t = t_ref[...].astype(jnp.float32)       # one-hot targets
    w = w_ref[...].astype(jnp.float32)       # per-element (pre-broadcast) weights

    # One shared transcendental feeds both the stable sigmoid and the log term.
    e = jnp.exp(-jnp.abs(x))
    inv = 1.0 / (1.0 + e)                    # exact (approx recip broke tolerance)
    sig = jnp.where(x >= 0.0, inv, e * inv)  # numerically stable sigmoid(x)

    # Strength-reduced forms (constants folded at trace time):
    #   alpha_w = t*alpha + (1-t)*(1-alpha) = (1-alpha) + t*(2*alpha - 1)
    #   pt      = t*(1-sig) + (1-t)*sig     = sig + t*(1 - 2*sig)
    alpha_w = (1.0 - alpha) + t * (2.0 * alpha - 1.0)
    pt = sig + t * (1.0 - 2.0 * sig)
    if gamma == 2.0:                         # default: avoid pow
        focal_w = alpha_w * pt * pt
    elif gamma == 1.0:
        focal_w = alpha_w * pt
    else:
        focal_w = alpha_w * jnp.power(pt, jnp.float32(gamma))

    # sigmoid_cross_entropy_with_logits: max(x,0) - x*t + log(1 + exp(-|x|))
    bce = jnp.maximum(x, 0.0) - x * t + jnp.log(1.0 + e)

    o_ref[...] = (focal_w * bce * w).astype(o_ref.dtype)


# ----------------------------------------------------------------------------
# Wrapper: zero-copy flat layout, padding to the tile, tiled 1-D grid.
# ----------------------------------------------------------------------------
def _forward_impl(x, t, w, *, alpha, gamma):
    B, P, C = x.shape
    out_dtype = x.dtype
    N = B * P * C

    # Per-anchor weight expanded to per-element once (single extra array pass,
    # keeps the lane-dense flat layout; far cheaper than relayout transposes).
    w_full = jnp.broadcast_to(w[..., None], (B, P, C)).astype(x.dtype)

    # Zero-copy contiguous flatten; no transposes anywhere.
    x_f = x.reshape(N)
    t_f = t.reshape(N)
    w_f = w_full.reshape(N)

    rows = pl.cdiv(N, _LANES)
    tile_rows = min(_DEFAULT_TILE_ROWS, _round_up(rows, 8))   # (8,128)-legal
    rows_p = _round_up(rows, tile_rows)
    n_pad = rows_p * _LANES - N
    if n_pad:
        # Zero padding is numerically safe (finite everywhere); sliced off below.
        x_f = jnp.pad(x_f, (0, n_pad))
        t_f = jnp.pad(t_f, (0, n_pad))
        w_f = jnp.pad(w_f, (0, n_pad))

    x2 = x_f.reshape(rows_p, _LANES)
    t2 = t_f.reshape(rows_p, _LANES)
    w2 = w_f.reshape(rows_p, _LANES)

    itemsize = jnp.dtype(x.dtype).itemsize
    block_bytes = tile_rows * _LANES * itemsize
    # double-buffered (3 inputs + 1 output) + headroom; well under every chip's
    # scoped default for the 512 KiB default block.
    vmem_limit = min(int(2 * 4 * block_bytes) + (4 << 20), 128 << 20)

    n_elems = rows_p * _LANES
    kernel = functools.partial(_focal_loss_kernel, alpha=alpha, gamma=gamma)
    spec = pl.BlockSpec((tile_rows, _LANES), lambda i: (i, 0))

    out2 = pl.pallas_call(
        kernel,
        out_shape=jax.ShapeDtypeStruct((rows_p, _LANES), out_dtype),
        grid=(rows_p // tile_rows,),
        in_specs=[spec, spec, spec],
        out_specs=spec,
        compiler_params=pltpu.CompilerParams(
            dimension_semantics=("parallel",),   # megacore sharding on v7x
            vmem_limit_bytes=vmem_limit,
        ),
        cost_estimate=pl.CostEstimate(
            flops=20 * n_elems,
            transcendentals=2 * n_elems,
            bytes_accessed=(3 + 1) * n_elems * itemsize,
        ),
    )(x2, t2, w2)

    return out2.reshape(-1)[:N].reshape(B, P, C)


class SigmoidFocalClassificationLoss:
    """JAX/Pallas port of the PyTorch SigmoidFocalClassificationLoss module."""

    def __init__(self, gamma: float = 2.0, alpha: float = 0.25):
        self.gamma = float(gamma)
        self.alpha = float(alpha)
        # alpha/gamma are static Python floats baked into the jitted forward.
        self._forward = jax.jit(
            functools.partial(_forward_impl, alpha=self.alpha, gamma=self.gamma))

    def __call__(self, input, target, weights):
        # torch: weights.unsqueeze(-1); dims must match after unsqueeze
        assert weights.ndim + 1 == input.ndim
        assert input.shape == target.shape
        return self._forward(input, target, weights)

    forward = __call__


# ----------------------------------------------------------------------------
# Main: deterministic synthetic inputs, single run, reference check, KERNEL_OK.
# ----------------------------------------------------------------------------
if __name__ == "__main__":
    B, P, C = 2, 64, 8          # batch, #proposals, #classes

    key = jax.random.PRNGKey(0)
    k1, k2, k3 = jax.random.split(key, 3)

    logits = 2.0 * jax.random.normal(k1, (B, P, C), jnp.float32)
    cls = jax.random.randint(k2, (B, P), 0, C)
    target = jax.nn.one_hot(cls, C, dtype=jnp.float32)          # one-hot targets
    weights = jax.random.uniform(k3, (B, P), jnp.float32, 0.1, 1.0)

    loss_fn = SigmoidFocalClassificationLoss(gamma=2.0, alpha=0.25)
    out = loss_fn(logits, target, weights)
    jax.block_until_ready(out)

    # Pure-JAX reference (matches the PyTorch formula).
    sig = jax.nn.sigmoid(logits)
    alpha_w = target * 0.25 + (1.0 - target) * 0.75
    pt = target * (1.0 - sig) + (1.0 - target) * sig
    bce = (jnp.maximum(logits, 0.0) - logits * target
           + jnp.log1p(jnp.exp(-jnp.abs(logits))))
    ref = alpha_w * pt * pt * bce * weights[..., None]

    np.testing.assert_allclose(np.asarray(out), np.asarray(ref),
                               rtol=1e-3, atol=1e-5)
    print("KERNEL_OK")
</pallas_src>

<mosaic_0001>
module attributes {stable_mosaic.version = 11 : i64} {
  func.func @_focal_loss_kernel(%arg0: i32, %arg1: memref<8x128xf32, #tpu.memory_space<vmem>>, %arg2: memref<8x128xf32, #tpu.memory_space<vmem>>, %arg3: memref<8x128xf32, #tpu.memory_space<vmem>>, %arg4: memref<8x128xf32, #tpu.memory_space<vmem>>) attributes {dimension_semantics = [#tpu.dimension_semantics<parallel>], iteration_bounds = array<i64: 1>, scalar_prefetch = 0 : i64, scratch_operands = 0 : i64, tpu.core_type = #tpu.core_type<tc>, window_params = [{transform_indices = @transform_0, window_bounds = array<i64: 8, 128>}, {transform_indices = @transform_1, window_bounds = array<i64: 8, 128>}, {transform_indices = @transform_2, window_bounds = array<i64: 8, 128>}, {transform_indices = @transform_3, window_bounds = array<i64: 8, 128>}]} {
    %c0 = arith.constant 0 : index
    %c0_0 = arith.constant 0 : index
    %0 = vector.load %arg1[%c0, %c0_0] : memref<8x128xf32, #tpu.memory_space<vmem>>, vector<8x128xf32>
    %c0_1 = arith.constant 0 : index
    %c0_2 = arith.constant 0 : index
    %1 = vector.load %arg2[%c0_1, %c0_2] : memref<8x128xf32, #tpu.memory_space<vmem>>, vector<8x128xf32>
    %c0_3 = arith.constant 0 : index
    %c0_4 = arith.constant 0 : index
    %2 = vector.load %arg3[%c0_3, %c0_4] : memref<8x128xf32, #tpu.memory_space<vmem>>, vector<8x128xf32>
    %3 = math.absf %0 : vector<8x128xf32>
    %cst = arith.constant 0.000000e+00 : f32
    %4 = vector.broadcast %cst : f32 to vector<8x128xf32>
    %5 = arith.subf %4, %3 : vector<8x128xf32>
    %6 = math.exp %5 : vector<8x128xf32>
    %cst_5 = arith.constant 1.000000e+00 : f32
    %7 = vector.broadcast %cst_5 : f32 to vector<8x128xf32>
    %8 = arith.addf %7, %6 : vector<8x128xf32>
    %cst_6 = arith.constant 1.000000e+00 : f32
    %9 = vector.broadcast %cst_6 : f32 to vector<8x128xf32>
    %10 = arith.divf %9, %8 : vector<8x128xf32>
    %cst_7 = arith.constant 0.000000e+00 : f32
    %11 = vector.broadcast %cst_7 : f32 to vector<8x128xf32>
    %12 = arith.cmpf oge, %0, %11 : vector<8x128xf32>
    %13 = arith.mulf %6, %10 : vector<8x128xf32>
    %14 = arith.select %12, %10, %13 : vector<8x128xi1>, vector<8x128xf32>
    %cst_8 = arith.constant -5.000000e-01 : f32
    %15 = vector.broadcast %cst_8 : f32 to vector<8x128xf32>
    %16 = arith.mulf %1, %15 : vector<8x128xf32>
    %cst_9 = arith.constant 7.500000e-01 : f32
    %17 = vector.broadcast %cst_9 : f32 to vector<8x128xf32>
    %18 = arith.addf %17, %16 : vector<8x128xf32>
    %cst_10 = arith.constant 2.000000e+00 : f32
    %19 = vector.broadcast %cst_10 : f32 to vector<8x128xf32>
    %20 = arith.mulf %19, %14 : vector<8x128xf32>
    %cst_11 = arith.constant 1.000000e+00 : f32
    %21 = vector.broadcast %cst_11 : f32 to vector<8x128xf32>
    %22 = arith.subf %21, %20 : vector<8x128xf32>
    %23 = arith.mulf %1, %22 : vector<8x128xf32>
    %24 = arith.addf %14, %23 : vector<8x128xf32>
    %25 = arith.mulf %18, %24 : vector<8x128xf32>
    %26 = arith.mulf %25, %24 : vector<8x128xf32>
    %cst_12 = arith.constant 0.000000e+00 : f32
    %27 = vector.broadcast %cst_12 : f32 to vector<8x128xf32>
    %28 = arith.maximumf %0, %27 : vector<8x128xf32>
    %29 = arith.mulf %0, %1 : vector<8x128xf32>
    %30 = arith.subf %28, %29 : vector<8x128xf32>
    %cst_13 = arith.constant 1.000000e+00 : f32
    %31 = vector.broadcast %cst_13 : f32 to vector<8x128xf32>
    %32 = arith.addf %31, %6 : vector<8x128xf32>
    %33 = math.log %32 : vector<8x128xf32>
    %34 = arith.addf %30, %33 : vector<8x128xf32>
    %35 = arith.mulf %26, %34 : vector<8x128xf32>
    %36 = arith.mulf %35, %2 : vector<8x128xf32>
    %c0_14 = arith.constant 0 : index
    %c0_15 = arith.constant 0 : index
    %37 = vector.load %arg4[%c0_14, %c0_15] : memref<8x128xf32, #tpu.memory_space<vmem>>, vector<8x128xf32>
    tpu.vector_store %arg4[%c0_14, %c0_15], %36 {strides = array<i32>} : memref<8x128xf32, #tpu.memory_space<vmem>>, vector<8x128xf32>,
    return
  }
  func.func @transform_0(%arg0: i32) -> (i32, i32) {
    %c0_i32 = arith.constant 0 : i32
    %c0_i32_0 = arith.constant 0 : i32
    return %arg0, %c0_i32 : i32, i32
  }
  func.func @transform_1(%arg0: i32) -> (i32, i32) {
    %c0_i32 = arith.constant 0 : i32
    %c0_i32_0 = arith.constant 0 : i32
    return %arg0, %c0_i32 : i32, i32
  }
  func.func @transform_2(%arg0: i32) -> (i32, i32) {
    %c0_i32 = arith.constant 0 : i32
    %c0_i32_0 = arith.constant 0 : i32
    return %arg0, %c0_i32 : i32, i32
  }
  func.func @transform_3(%arg0: i32) -> (i32, i32) {
    %c0_i32 = arith.constant 0 : i32
    %c0_i32_0 = arith.constant 0 : i32
    return %arg0, %c0_i32 : i32, i32
  }
}

</mosaic_0001>

<llo_original>
// kernel: _forward_impl.1
$region0: #{_forward_impl.1}
  #allocation0 [shape = 'u32[]', space=smem, size = 0x4, offset = 0x4, fixed_abs, tag = 'smem constant byte address 0x4 - core index']
  #allocation1 [shape = 'u32[144,128]{1,0:T(1,128)}', space=vmem, size = 0x12000, scoped, tag = 'internal scratch']
  %s0 = inlined_call_operand.vmem [shape: f32[8,128], index: 0, kind: input, shape index: {}]
  %s1 = inlined_call_operand.vmem [shape: f32[8,128], index: 1, kind: input, shape index: {}]
  %s2 = inlined_call_operand.vmem [shape: f32[8,128], index: 2, kind: input, shape index: {}]
  %s3 = inlined_call_operand.vmem [shape: f32[8,128], index: 3, kind: output, shape index: {}]
  %s4 = sld [smem:[#allocation0]]
  $region22: #{_forward_impl.1} parent=0
    _
  %s6 = ssub.s32 1, %s4
  %s7 = scalar_select 0, %s6, %s4
  // Predicated region
  $region2: #{_forward_impl.1} parent=0 // pred_check
    _
  $region3: #{_forward_impl.1} parent=0 // pred_check_branch
    %9 = sbr.rel (0) target = $region5
  $region4: #{_forward_impl.1} parent=0 // pred_region
    _
  $region5: #{_forward_impl.1} parent=0 // pred_fallthru
    _
  // Predicated region
  $region6: #{_forward_impl.1} parent=0 // pred_check
    _
  $region7: #{_forward_impl.1} parent=0 // pred_check_branch
    %11 = sbr.rel (0) target = $region9
  $region8: #{_forward_impl.1} parent=0 // pred_region
    _
  $region9: #{_forward_impl.1} parent=0 // pred_fallthru
    _
  // Predicated region
  $region10: #{_forward_impl.1} parent=0 // pred_check
    _
  $region11: #{_forward_impl.1} parent=0 // pred_check_branch
    %13 = sbr.rel (0) target = $region13
  $region12: #{_forward_impl.1} parent=0 // pred_region
    _
  $region13: #{_forward_impl.1} parent=0 // pred_fallthru
    _
  %v14 = vld [vmem:[%s0] sm:$0xff]
  %v15 = vld [vmem:[%s1] sm:$0xff]
  %v16 = vld [vmem:[%s2] sm:$0xff]
  %v17 = vand.u32 2147483647, %v14
  %v18 = vsub.f32 0.0, %v17
  %v19 = vmul.f32 %v18, 1.442695
  %v20 = vpow.pop %v19
  %v21 = vadd.f32 %v20, 1.0
  %v22 = vrcp.pop %v21
  %v23 = vmul.f32 1.0, %v22
  %vm24 = vcmp.ge.f32.partialorder %v14, 0.0
  %v25 = vmul.f32 %v20, %v23
  %v26 = vsel %vm24, %v23, %v25
  %v27 = vmul.f32 %v15, -0.5
  %v28 = vadd.f32 %v27, 0.75
  %v29 = vmul.f32 %v26, 2.0
  %v30 = vsub.f32 1.0, %v29
  %v31 = vmul.f32 %v15, %v30
  %v32 = vadd.f32 %v26, %v31
  %v33 = vmul.f32 %v28, %v32
  %v34 = vmul.f32 %v33, %v32
  %v35 = vmax.f32 %v14, 0.0
  %v36 = vmul.f32 %v14, %v15
  %v37 = vsub.f32 %v35, %v36
  %v38 = vlog2.pop %v21
  %v39 = vmul.f32 %v38, 0.6931472
  %v40 = vadd.f32 %v37, %v39
  %v41 = vmul.f32 %v34, %v40
  %v42 = vmul.f32 %v41, %v16
  %43 = vst [vmem:[%s3] sm:$0xff] %v42
  // Predicated region
  $region14: #{_forward_impl.1} parent=0 // pred_check
    _
  $region15: #{_forward_impl.1} parent=0 // pred_check_branch
    %45 = sbr.rel (0) target = $region17
  $region16: #{_forward_impl.1} parent=0 // pred_region
    _
  $region17: #{_forward_impl.1} parent=0 // pred_fallthru
    _
  // Predicated region
  $region18: #{_forward_impl.1} parent=0 // pred_check
    _
  $region19: #{_forward_impl.1} parent=0 // pred_check_branch
    %47 = sbr.rel (0) target = $region21
  $region20: #{_forward_impl.1} parent=0 // pred_region
    _
  $region21: #{_forward_impl.1} parent=0 // pred_fallthru
    _

</llo_original>
